<compile_context>
chip_gen: v7x
topology: tpu7x:2x2x1
jax: 0.10.0
libtpu: 0.0.40
codegen_flags: <defaults>
</compile_context>

<pallas_src>
import jax
import jax.numpy as jnp
from jax.experimental import pallas as pl
from jax.experimental.pallas import tpu as pltpu

_NUM_LIVE_BUFFERS = 10  # (2 inputs + 3 outputs) x double buffering


def _sublane_align(dtype) -> int:
    """Sublane alignment: 8 for 32-bit, 16 for 16-bit, 32 for 8-bit dtypes."""
    bits = jnp.dtype(dtype).itemsize * 8
    return max(8, 256 // max(bits, 1))


def _vmem_budget():
    """(per-buffer tile byte budget, scoped VMEM limit) for the local TPU."""
    try:
        physical = int(pltpu.get_tpu_info().vmem_capacity_bytes)
    except Exception:
        physical = 64 << 20  # conservative (v7x-sized) fallback
    # 10 live buffers at physical/32 each -> ~31% of physical VMEM, leaving
    # ample headroom for compiler internal scratch on every generation.
    per_buffer = physical // 32
    vmem_limit = min(64 << 20, (physical * 3) // 4)
    return per_buffer, vmem_limit


def _as_lane_dense_2d(x: jax.Array) -> jax.Array:
    """Reshape to a wide lane-dense (rows, cols) slab.

    The op is purely elementwise, so any reshape applied consistently to both
    inputs (and undone on the outputs) is legal.  A wide multiple-of-128 width
    makes every block's HBM DMA contiguous and stores unmasked."""
    n = x.size
    for cols in (4096, 2048, 1024, 512, 256, 128):
        if n % cols == 0:
            return x.reshape(n // cols, cols)
    if x.ndim == 2:
        return x
    cols = x.shape[-1] if x.ndim >= 1 else 1
    return x.reshape(-1, cols)


def _mymodel_kernel(x_ref, t_ref, add_ref, mul_ref, r2_ref, r3_ref, r4_ref):
    x = x_ref[...]
    t = t_ref[...]
    # SMEM scalars are kept 32-bit (SMEM is a 32-bit scalar path); cast to the
    # compute dtype here.
    a = add_ref[0].astype(x.dtype)
    m = mul_ref[0].astype(x.dtype)
    r2 = x + t
    r3 = r2 + a
    r4 = r3 * m
    r2_ref[...] = r2
    r3_ref[...] = r3
    r4_ref[...] = r4


def mymodel_forward(x: jax.Array, mytensor: jax.Array,
                    elem_add, elem_multiply):
    """Pallas equivalent of MyModel.forward. x and mytensor must share a shape."""
    assert x.shape == mytensor.shape, "kernel assumes matching shapes"
    orig_shape = x.shape

    x2 = _as_lane_dense_2d(x)
    t2 = jnp.reshape(mytensor, x2.shape)
    rows, cols = x2.shape
    dtype = x2.dtype
    itemsize = jnp.dtype(dtype).itemsize
    align_r = _sublane_align(dtype)

    per_buffer_bytes, vmem_limit_bytes = _vmem_budget()

    # --- Tile selection ------------------------------------------------------
    # Prefer full-row-width tiles (contiguous HBM DMA, lane-dense stores) and
    # split only along rows; fall back to splitting columns only for
    # pathologically wide rows.
    if cols * itemsize * align_r <= per_buffer_bytes:
        tile_c = cols
    else:
        tile_c = (per_buffer_bytes // (align_r * itemsize)) // 128 * 128
        tile_c = max(128, min(tile_c, cols))

    tile_r = (per_buffer_bytes // (tile_c * itemsize)) // align_r * align_r
    tile_r = max(align_r, tile_r)
    tile_r = min(tile_r, rows)

    # v7x has 2 TensorCores sharing HBM: keep the leading "parallel" grid axis
    # >= 2 whenever the row count allows it so neither core idles.
    if pl.cdiv(rows, tile_r) < 2 and rows >= 2 * align_r:
        half = ((rows + 1) // 2 + align_r - 1) // align_r * align_r
        if half < rows:
            tile_r = half

    grid = (pl.cdiv(rows, tile_r), pl.cdiv(cols, tile_c))

    tile_spec = pl.BlockSpec((tile_r, tile_c), lambda i, j: (i, j))
    smem_spec = pl.BlockSpec(memory_space=pltpu.MemorySpace.SMEM)

    scalar_dtype = jnp.float32 if jnp.issubdtype(dtype, jnp.floating) else jnp.int32
    add_arr = jnp.asarray([elem_add], dtype=scalar_dtype)
    mul_arr = jnp.asarray([elem_multiply], dtype=scalar_dtype)

    out_sd = jax.ShapeDtypeStruct((rows, cols), dtype)

    r2, r3, r4 = pl.pallas_call(
        _mymodel_kernel,
        out_shape=(out_sd, out_sd, out_sd),
        grid=grid,
        in_specs=[tile_spec, tile_spec, smem_spec, smem_spec],
        out_specs=(tile_spec, tile_spec, tile_spec),
        compiler_params=pltpu.CompilerParams(
            dimension_semantics=("parallel", "parallel"),
            vmem_limit_bytes=int(vmem_limit_bytes)),
    )(x2, t2, add_arr, mul_arr)

    if (rows, cols) != orig_shape:
        r2 = r2.reshape(orig_shape)
        r3 = r3.reshape(orig_shape)
        r4 = r4.reshape(orig_shape)
    return r2, r3, r4


if __name__ == "__main__":
    key = jax.random.PRNGKey(0)

    # Small shape consistent with the module's purely elementwise forward.
    shape = (2, 4, 16, 16)
    dtype = jnp.float32

    # Mirrors MyModel(torch.ones(...), 4, 6).
    mytensor = jnp.ones(shape, dtype=dtype)
    elem_add = 4
    elem_multiply = 6

    x = jax.random.normal(key, shape, dtype=dtype)

    r2, r3, r4 = mymodel_forward(x, mytensor, elem_add, elem_multiply)
    jax.block_until_ready((r2, r3, r4))

    # Reference check in plain JAX.
    ref2 = x + mytensor
    ref3 = ref2 + elem_add
    ref4 = ref3 * elem_multiply
    assert r2.shape == shape and r3.shape == shape and r4.shape == shape
    assert jnp.allclose(r2, ref2)
    assert jnp.allclose(r3, ref3)
    assert jnp.allclose(r4, ref4)

    print("KERNEL_OK")
</pallas_src>

<mosaic_0001>
module attributes {stable_mosaic.version = 11 : i64} {
  func.func @_mymodel_kernel(%arg0: i32, %arg1: i32, %arg2: memref<1x2048xf32, #tpu.memory_space<vmem>>, %arg3: memref<1x2048xf32, #tpu.memory_space<vmem>>, %arg4: memref<1xf32, #tpu.memory_space<smem>>, %arg5: memref<1xf32, #tpu.memory_space<smem>>, %arg6: memref<1x2048xf32, #tpu.memory_space<vmem>>, %arg7: memref<1x2048xf32, #tpu.memory_space<vmem>>, %arg8: memref<1x2048xf32, #tpu.memory_space<vmem>>) attributes {dimension_semantics = [#tpu.dimension_semantics<parallel>, #tpu.dimension_semantics<parallel>], iteration_bounds = array<i64: 1, 1>, scalar_prefetch = 0 : i64, scratch_operands = 0 : i64, tpu.core_type = #tpu.core_type<tc>, window_params = [{transform_indices = @transform_0, window_bounds = array<i64: 1, 2048>}, {transform_indices = @transform_1, window_bounds = array<i64: 1, 2048>}, {transform_indices = @transform_2, window_bounds = array<i64: 1>}, {transform_indices = @transform_3, window_bounds = array<i64: 1>}, {transform_indices = @transform_4, window_bounds = array<i64: 1, 2048>}, {transform_indices = @transform_5, window_bounds = array<i64: 1, 2048>}, {transform_indices = @transform_6, window_bounds = array<i64: 1, 2048>}]} {
    %c0 = arith.constant 0 : index
    %c0_0 = arith.constant 0 : index
    %0 = vector.load %arg2[%c0, %c0_0] : memref<1x2048xf32, #tpu.memory_space<vmem>>, vector<1x2048xf32>
    %c0_1 = arith.constant 0 : index
    %c0_2 = arith.constant 0 : index
    %1 = vector.load %arg3[%c0_1, %c0_2] : memref<1x2048xf32, #tpu.memory_space<vmem>>, vector<1x2048xf32>
    %c0_3 = arith.constant 0 : index
    %2 = memref.load %arg4[%c0_3] : memref<1xf32, #tpu.memory_space<smem>>
    %c0_4 = arith.constant 0 : index
    %3 = memref.load %arg5[%c0_4] : memref<1xf32, #tpu.memory_space<smem>>
    %4 = arith.addf %0, %1 : vector<1x2048xf32>
    %5 = vector.broadcast %2 : f32 to vector<1x2048xf32>
    %6 = arith.addf %4, %5 : vector<1x2048xf32>
    %7 = vector.broadcast %3 : f32 to vector<1x2048xf32>
    %8 = arith.mulf %6, %7 : vector<1x2048xf32>
    %c0_5 = arith.constant 0 : index
    %c0_6 = arith.constant 0 : index
    %9 = vector.load %arg6[%c0_5, %c0_6] : memref<1x2048xf32, #tpu.memory_space<vmem>>, vector<1x2048xf32>
    tpu.vector_store %arg6[%c0_5, %c0_6], %4 {strides = array<i32>} : memref<1x2048xf32, #tpu.memory_space<vmem>>, vector<1x2048xf32>,
    %c0_7 = arith.constant 0 : index
    %c0_8 = arith.constant 0 : index
    %10 = vector.load %arg7[%c0_7, %c0_8] : memref<1x2048xf32, #tpu.memory_space<vmem>>, vector<1x2048xf32>
    tpu.vector_store %arg7[%c0_7, %c0_8], %6 {strides = array<i32>} : memref<1x2048xf32, #tpu.memory_space<vmem>>, vector<1x2048xf32>,
    %c0_9 = arith.constant 0 : index
    %c0_10 = arith.constant 0 : index
    %11 = vector.load %arg8[%c0_9, %c0_10] : memref<1x2048xf32, #tpu.memory_space<vmem>>, vector<1x2048xf32>
    tpu.vector_store %arg8[%c0_9, %c0_10], %8 {strides = array<i32>} : memref<1x2048xf32, #tpu.memory_space<vmem>>, vector<1x2048xf32>,
    return
  }
  func.func @transform_0(%arg0: i32, %arg1: i32) -> (i32, i32) {
    %c0_i32 = arith.constant 0 : i32
    return %arg0, %arg1 : i32, i32
  }
  func.func @transform_1(%arg0: i32, %arg1: i32) -> (i32, i32) {
    %c0_i32 = arith.constant 0 : i32
    return %arg0, %arg1 : i32, i32
  }
  func.func @transform_2(%arg0: i32, %arg1: i32) -> i32 {
    %c0_i32 = arith.constant 0 : i32
    %c0_i32_0 = arith.constant 0 : i32
    return %c0_i32 : i32
  }
  func.func @transform_3(%arg0: i32, %arg1: i32) -> i32 {
    %c0_i32 = arith.constant 0 : i32
    %c0_i32_0 = arith.constant 0 : i32
    return %c0_i32 : i32
  }
  func.func @transform_4(%arg0: i32, %arg1: i32) -> (i32, i32) {
    %c0_i32 = arith.constant 0 : i32
    return %arg0, %arg1 : i32, i32
  }
  func.func @transform_5(%arg0: i32, %arg1: i32) -> (i32, i32) {
    %c0_i32 = arith.constant 0 : i32
    return %arg0, %arg1 : i32, i32
  }
  func.func @transform_6(%arg0: i32, %arg1: i32) -> (i32, i32) {
    %c0_i32 = arith.constant 0 : i32
    return %arg0, %arg1 : i32, i32
  }
}

</mosaic_0001>

<llo_original>
// kernel: tpu_custom_call.1
$region0: #{tpu_custom_call.1}
  #allocation0 [shape = 'u32[]', space=smem, size = 0x4, offset = 0x4, fixed_abs, tag = 'smem constant byte address 0x4 - core index']
  #allocation1 [shape = 'u32[144,128]{1,0:T(1,128)}', space=vmem, size = 0x12000, scoped, tag = 'internal scratch']
  #allocation2 [shape = 'f32[1]{0:T(128)S(6)}', space=smem, size = 0x200, scoped, tag = 'scoped memory for tpu_custom_call.1']
  #allocation3 [shape = 'f32[1]{0:T(128)S(6)}', space=smem, size = 0x200, scoped, tag = 'scoped memory for tpu_custom_call.1']
  %s0 = inlined_call_operand.hbm [shape: f32[1,2048], index: 0, kind: input, shape index: {}]
  %s1 = inlined_call_operand.hbm [shape: f32[1,2048], index: 1, kind: input, shape index: {}]
  %s2 = inlined_call_operand.<no memory space> [shape: f32[1], index: 2, kind: input, shape index: {}]
  %s3 = inlined_call_operand.<no memory space> [shape: f32[1], index: 3, kind: input, shape index: {}]
  %s4 = inlined_call_operand.hbm [shape: f32[1,2048], index: 4, kind: output, shape index: {0}]
  %s5 = inlined_call_operand.hbm [shape: f32[1,2048], index: 5, kind: output, shape index: {1}]
  %s6 = inlined_call_operand.hbm [shape: f32[1,2048], index: 6, kind: output, shape index: {2}]
  %7 = xla_tuple %s4, %s5, %s6
  %s8 = sld [smem:[#allocation0]]
  $region50: #{tpu_custom_call.1} parent=0
    _
  %s10 = ssub.s32 1, %s8
  %s11 = scalar_select 0, %s10, %s8
  %12 = sst [smem:[#allocation2]] %s2
  %13 = sst [smem:[#allocation3]] %s3
  $region1: #{tpu_custom_call.1} parent=0
    #allocation4 [shape = 'u8[8192]{0}', space=vmem, size = 0x2000, scoped, tag = 'input window, operand 0, single buffered']
    #allocation5 [shape = 's32[1]{0}', space=sflag, size = 0x4, scoped, tag = 'scoped memory for tpu_custom_call.1']
    #allocation6 [shape = 's32[1]{0}', space=sflag, size = 0x4, scoped, tag = 'scoped memory for tpu_custom_call.1']
    #allocation7 [shape = 'u8[8192]{0}', space=vmem, size = 0x2000, scoped, tag = 'input window, operand 1, single buffered']
    #allocation8 [shape = 's32[1]{0}', space=sflag, size = 0x4, scoped, tag = 'scoped memory for tpu_custom_call.1']
    #allocation9 [shape = 'u8[8192]{0}', space=vmem, size = 0x2000, scoped, tag = 'output window, operand 0, single buffered']
    #allocation10 [shape = 'u8[8192]{0}', space=vmem, size = 0x2000, scoped, tag = 'output window, operand 1, single buffered']
    #allocation11 [shape = 's32[1]{0}', space=sflag, size = 0x4, scoped, tag = 'scoped memory for tpu_custom_call.1']
    #allocation12 [shape = 'u8[8192]{0}', space=vmem, size = 0x2000, scoped, tag = 'output window, operand 2, single buffered']
    %14 = vsyncpa [#allocation5], 0
    %15 = vsyncpa [#allocation8], 0
    %16 = vsyncpa [#allocation6], 0
    %17 = vsyncpa [#allocation11], 0
    // Predicated region
    $region2: #{tpu_custom_call.1} parent=1 // pred_check
      _
    $region3: #{tpu_custom_call.1} parent=1 // pred_check_branch
      %19 = sbr.rel (0) target = $region5
    $region4: #{tpu_custom_call.1} parent=1 // pred_region
      %s21 = ssub.s32 256, 256
      %22 = vsyncadd [#allocation5], %s21
      %s24 = sshll.u32 [#allocation4], 4
      %s25 = int_to_ptr.vmem [resolvable:$true] %s24
      %27 = dma.hbm_to_vmem [thread:$0]  %s0, 256, %s25, [#allocation5]
    $region5: #{tpu_custom_call.1} parent=1 // pred_fallthru
      _
    // Predicated region
    $region6: #{tpu_custom_call.1} parent=1 // pred_check
      _
    $region7: #{tpu_custom_call.1} parent=1 // pred_check_branch
      %29 = sbr.rel (0) target = $region9
    $region8: #{tpu_custom_call.1} parent=1 // pred_region
      %s31 = ssub.s32 256, 256
      %32 = vsyncadd [#allocation8], %s31
      %s34 = sshll.u32 [#allocation7], 4
      %s35 = int_to_ptr.vmem [resolvable:$true] %s34
      %37 = dma.hbm_to_vmem [thread:$0]  %s1, 256, %s35, [#allocation8]
    $region9: #{tpu_custom_call.1} parent=1 // pred_fallthru
      _
    // Predicated region
    $region10: #{tpu_custom_call.1} parent=1 // pred_check
      _
    $region11: #{tpu_custom_call.1} parent=1 // pred_check_branch
      %39 = sbr.rel (0) target = $region13
    $region12: #{tpu_custom_call.1} parent=1 // pred_region
      _
    $region13: #{tpu_custom_call.1} parent=1 // pred_fallthru
      _
    // Predicated region
    $region14: #{tpu_custom_call.1} parent=1 // pred_check
      _
    $region15: #{tpu_custom_call.1} parent=1 // pred_check_branch
      %41 = sbr.rel (0) target = $region17
    $region16: #{tpu_custom_call.1} parent=1 // pred_region
      _
    $region17: #{tpu_custom_call.1} parent=1 // pred_fallthru
      _
    // Predicated region
    $region18: #{tpu_custom_call.1} parent=1 // pred_check
      _
    $region19: #{tpu_custom_call.1} parent=1 // pred_check_branch
      %43 = sbr.rel (0) target = $region21
    $region20: #{tpu_custom_call.1} parent=1 // pred_region
      %44 = dma.done [#allocation5], 256
    $region21: #{tpu_custom_call.1} parent=1 // pred_fallthru
      _
    // Predicated region
    $region22: #{tpu_custom_call.1} parent=1 // pred_check
      _
    $region23: #{tpu_custom_call.1} parent=1 // pred_check_branch
      %46 = sbr.rel (0) target = $region25
    $region24: #{tpu_custom_call.1} parent=1 // pred_region
      %47 = dma.done [#allocation8], 256
    $region25: #{tpu_custom_call.1} parent=1 // pred_fallthru
      _
    %v48 = vld [vmem:[#allocation4] sm:$0xff]
    %v49 = vld [vmem:[#allocation4 + $0x8] sm:$0xff]
    %v50 = vld [vmem:[#allocation7] sm:$0xff]
    %v51 = vld [vmem:[#allocation7 + $0x8] sm:$0xff]
    %s52 = sld [smem:[#allocation2]]
    %s53 = sld [smem:[#allocation3]]
    %v54 = vadd.f32 %v48, %v50
    %v55 = vadd.f32 %v49, %v51
    %v56 = vstv %s52
    %v57 = vadd.f32 %v54, %v56
    %v58 = vadd.f32 %v55, %v56
    %v59 = vstv %s53
    %v60 = vmul.f32 %v57, %v59
    %v61 = vmul.f32 %v58, %v59
    %62 = vst [vmem:[#allocation9] sm:$0xff] %v54
    %63 = vst [vmem:[#allocation9 + $0x8] sm:$0xff] %v55
    %64 = vst [vmem:[#allocation10] sm:$0xff] %v57
    %65 = vst [vmem:[#allocation10 + $0x8] sm:$0xff] %v58
    %66 = vst [vmem:[#allocation12] sm:$0xff] %v60
    %67 = vst [vmem:[#allocation12 + $0x8] sm:$0xff] %v61
    // Predicated region
    $region26: #{tpu_custom_call.1} parent=1 // pred_check
      _
    $region27: #{tpu_custom_call.1} parent=1 // pred_check_branch
      %69 = sbr.rel (0) target = $region29
    $region28: #{tpu_custom_call.1} parent=1 // pred_region
      %s71 = ssub.s32 256, 256
      %72 = vsyncadd [#allocation6], %s71
      %s74 = sshll.u32 [#allocation9], 4
      %s75 = int_to_ptr.vmem [resolvable:$true] %s74
      %77 = dma.vmem_to_hbm [thread:$0]  %s75, 256, %s4, [#allocation6]
    $region29: #{tpu_custom_call.1} parent=1 // pred_fallthru
      _
    // Predicated region
    $region30: #{tpu_custom_call.1} parent=1 // pred_check
      _
    $region31: #{tpu_custom_call.1} parent=1 // pred_check_branch
      %79 = sbr.rel (0) target = $region33
    $region32: #{tpu_custom_call.1} parent=1 // pred_region
      %s81 = ssub.s32 256, 256
      %82 = vsyncadd [#allocation11], %s81
      %s84 = sshll.u32 [#allocation10], 4
      %s85 = int_to_ptr.vmem [resolvable:$true] %s84
      %87 = dma.vmem_to_hbm [thread:$0]  %s85, 256, %s5, [#allocation11]
    $region33: #{tpu_custom_call.1} parent=1 // pred_fallthru
      _
    // Predicated region
    $region34: #{tpu_custom_call.1} parent=1 // pred_check
      _
    $region35: #{tpu_custom_call.1} parent=1 // pred_check_branch
      %89 = sbr.rel (0) target = $region37
    $region36: #{tpu_custom_call.1} parent=1 // pred_region
      %s91 = ssub.s32 256, 256
      %92 = vsyncadd [#allocation11], %s91
      %s94 = sshll.u32 [#allocation12], 4
      %s95 = int_to_ptr.vmem [resolvable:$true] %s94
      %97 = dma.vmem_to_hbm [thread:$0]  %s95, 256, %s6, [#allocation11]
    $region37: #{tpu_custom_call.1} parent=1 // pred_fallthru
      _
    // Predicated region
    $region38: #{tpu_custom_call.1} parent=1 // pred_check
      _
    $region39: #{tpu_custom_call.1} parent=1 // pred_check_branch
      %99 = sbr.rel (0) target = $region41
    $region40: #{tpu_custom_call.1} parent=1 // pred_region
      %100 = dma.done [#allocation6], 256
    $region41: #{tpu_custom_call.1} parent=1 // pred_fallthru
      _
    // Predicated region
    $region42: #{tpu_custom_call.1} parent=1 // pred_check
      _
    $region43: #{tpu_custom_call.1} parent=1 // pred_check_branch
      %102 = sbr.rel (0) target = $region45
    $region44: #{tpu_custom_call.1} parent=1 // pred_region
      %103 = dma.done [#allocation11], 256
    $region45: #{tpu_custom_call.1} parent=1 // pred_fallthru
      _
    // Predicated region
    $region46: #{tpu_custom_call.1} parent=1 // pred_check
      _
    $region47: #{tpu_custom_call.1} parent=1 // pred_check_branch
      %105 = sbr.rel (0) target = $region49
    $region48: #{tpu_custom_call.1} parent=1 // pred_region
      %106 = dma.done [#allocation11], 256
    $region49: #{tpu_custom_call.1} parent=1 // pred_fallthru
      _
    %107 = vsyncpa [#allocation5], 1
    %108 = vsyncpa [#allocation8], 1
    %109 = vsyncpa [#allocation6], 1
    %110 = vsyncpa [#allocation11], 1

</llo_original>
